<compile_context>
chip_gen: v7x
topology: tpu7x:2x2x1
jax: 0.10.0
libtpu: 0.0.40
codegen_flags: <defaults>
</compile_context>

<pallas_src>
import math
from functools import partial

import jax
import jax.numpy as jnp
from jax.experimental import pallas as pl
from jax.experimental.pallas import tpu as pltpu


# ------------------------------- Pallas kernel --------------------------------


def _posenc_kernel(x_ref, pe_ref, o_ref, *, batch, block_t):
    # x_ref / o_ref: (block_t, B*E) tile.  pe_ref: (T_pad, E), resident across all steps.
    i = pl.program_id(0)
    start = pl.multiple_of(i * block_t, block_t)
    pe_blk = pe_ref[pl.ds(start, block_t), :]            # (block_t, E)
    if batch > 1:
        # Broadcast pe over the batch dim on-chip: (block_t, E) -> (block_t, B*E),
        # matching the row-major flattening of (block_t, B, E).
        pe_blk = jnp.tile(pe_blk, (1, batch))
    o_ref[...] = (x_ref[...] + pe_blk).astype(o_ref.dtype)


# ------------------------------ wrapper / buffer -------------------------------


def make_positional_encoding_table(d_model, max_len=25, dtype=jnp.float32):
    """Builds the same `pe` buffer as the PyTorch module: shape (max_len, 1, d_model)."""
    position = jnp.arange(max_len, dtype=jnp.float32)[:, None]                      # (L, 1)
    div_term = jnp.exp(
        jnp.arange(0, d_model, 2, dtype=jnp.float32) * (-math.log(10000.0) / d_model)
    )                                                                                # (ceil(E/2),)
    angles = position * div_term                                                     # (L, ceil(E/2))
    n_sin = (d_model + 1) // 2   # even slots
    n_cos = d_model // 2         # odd slots
    pe = jnp.zeros((max_len, d_model), jnp.float32)
    pe = pe.at[:, 0::2].set(jnp.sin(angles)[:, :n_sin])
    pe = pe.at[:, 1::2].set(jnp.cos(angles)[:, :n_cos])
    return pe.reshape(max_len, 1, d_model).astype(dtype)


def positional_encoding_forward(x, pe, *, vmem_budget_bytes=16 * 1024 * 1024):
    """x: (T, B, E); pe: (max_len, 1, E).  Returns x + pe[:T]  (dropout == identity)."""
    T, B, E = x.shape
    assert pe.shape[0] >= T and pe.shape[2] == E, "pe buffer too small / wrong d_model"
    itemsize = jnp.dtype(x.dtype).itemsize
    BE = B * E

    # Sublane granularity: 8 rows for 32-bit dtypes, 16 for 16-bit packed dtypes.
    sub = 8 * max(1, 4 // itemsize)

    # Per grid step the pipeline holds ~2 x-tiles + 2 out-tiles (double buffering):
    #   4 * block_t * BE * itemsize bytes.  Derive block_t from the VMEM budget.
    bt = vmem_budget_bytes // (4 * BE * itemsize)
    bt = max(sub, (bt // sub) * sub)
    block_t = min(T, bt)
    num_blocks = pl.cdiv(T, block_t)

    # Prefer an even number of grid steps when there is more than one (v7x: 2 TCs).
    if num_blocks > 1 and num_blocks % 2 == 1:
        block_t_try = ((pl.cdiv(T, num_blocks + 1) + sub - 1) // sub) * sub
        block_t_try = max(sub, min(block_t_try, block_t))
        if pl.cdiv(T, block_t_try) % 2 == 0:
            block_t = block_t_try
            num_blocks = pl.cdiv(T, block_t)
    t_pad = num_blocks * block_t

    # Lane-dense, zero-copy (row-major) view of the activations: (T, B, E) -> (T, B*E).
    x2 = x.reshape(T, BE)

    # Small resident pe table (f32), padded so the in-kernel pl.ds never reads OOB rows.
    pe_t = jax.lax.slice_in_dim(pe, 0, T, axis=0).reshape(T, E).astype(jnp.float32)
    if t_pad > T:
        pe_t = jnp.pad(pe_t, ((0, t_pad - T), (0, 0)))

    # Explicit VMEM limit with headroom (stays well under v7x's 64 MiB physical).
    step_bytes = 4 * block_t * BE * itemsize + 2 * t_pad * E * 4
    vmem_limit = int(min(56 * 1024 * 1024, max(32 * 1024 * 1024, 2 * step_bytes)))

    out2 = pl.pallas_call(
        partial(_posenc_kernel, batch=B, block_t=block_t),
        grid=(num_blocks,),
        in_specs=[
            pl.BlockSpec((block_t, BE), lambda i: (i, 0)),   # activation slab (pipelined)
            pl.BlockSpec((t_pad, E), lambda i: (0, 0)),      # pe: resident, one DMA total
        ],
        out_specs=pl.BlockSpec((block_t, BE), lambda i: (i, 0)),
        out_shape=jax.ShapeDtypeStruct((T, BE), x.dtype),
        compiler_params=pltpu.CompilerParams(
            dimension_semantics=("parallel",),   # independent T-blocks -> megacore-shardable
            vmem_limit_bytes=vmem_limit,
        ),
    )(x2, pe_t)
    return out2.reshape(T, B, E)


# ------------------------------ pure-JAX reference ------------------------------


def ref_positional_encoding(x, pe):
    T = x.shape[0]
    return x + pe[:T]


# -------------------------------------- main --------------------------------------

if __name__ == "__main__":
    d_model = 32
    max_len = 25
    T, B = 16, 2   # sequence length, batch

    key = jax.random.PRNGKey(0)
    x = jax.random.normal(key, (T, B, d_model), jnp.float32)

    pe = make_positional_encoding_table(d_model, max_len=max_len)

    ref = ref_positional_encoding(x, pe)

    out = positional_encoding_forward(x, pe)
    out = jax.block_until_ready(out)

    assert out.shape == (T, B, d_model)
    max_err = float(jnp.max(jnp.abs(out - ref)))
    assert jnp.allclose(out, ref, atol=1e-6, rtol=1e-6), f"max abs err = {max_err}"

    print("KERNEL_OK")
</pallas_src>

<mosaic_0001>
module attributes {stable_mosaic.version = 11 : i64} {
  func.func @_posenc_kernel(%arg0: i32, %arg1: memref<16x64xf32, #tpu.memory_space<vmem>>, %arg2: memref<16x32xf32, #tpu.memory_space<vmem>>, %arg3: memref<16x64xf32, #tpu.memory_space<vmem>>) attributes {dimension_semantics = [#tpu.dimension_semantics<parallel>], iteration_bounds = array<i64: 1>, scalar_prefetch = 0 : i64, scratch_operands = 0 : i64, tpu.core_type = #tpu.core_type<tc>, window_params = [{transform_indices = @transform_0, window_bounds = array<i64: 16, 64>}, {pipeline_mode = #tpu.pipeline_mode<synchronous>, transform_indices = @transform_1, window_bounds = array<i64: 16, 32>}, {transform_indices = @transform_2, window_bounds = array<i64: 16, 64>}]} {
    %c16_i32 = arith.constant 16 : i32
    %0 = arith.muli %arg0, %c16_i32 : i32
    %1 = tpu.assume_multiple %0, 16 : i32
    %2 = arith.index_cast %1 : i32 to index
    %c0 = arith.constant 0 : index
    %3 = vector.load %arg2[%2, %c0] : memref<16x32xf32, #tpu.memory_space<vmem>>, vector<16x32xf32>
    %4 = tpu.concatenate %3, %3 in 1 : vector<16x32xf32>, vector<16x32xf32> -> vector<16x64xf32>
    %c0_0 = arith.constant 0 : index
    %c0_1 = arith.constant 0 : index
    %5 = vector.load %arg1[%c0_0, %c0_1] : memref<16x64xf32, #tpu.memory_space<vmem>>, vector<16x64xf32>
    %6 = arith.addf %5, %4 : vector<16x64xf32>
    %c0_2 = arith.constant 0 : index
    %c0_3 = arith.constant 0 : index
    %7 = vector.load %arg3[%c0_2, %c0_3] : memref<16x64xf32, #tpu.memory_space<vmem>>, vector<16x64xf32>
    tpu.vector_store %arg3[%c0_2, %c0_3], %6 {strides = array<i32>} : memref<16x64xf32, #tpu.memory_space<vmem>>, vector<16x64xf32>,
    return
  }
  func.func @transform_0(%arg0: i32) -> (i32, i32) {
    %c0_i32 = arith.constant 0 : i32
    %c0_i32_0 = arith.constant 0 : i32
    return %arg0, %c0_i32 : i32, i32
  }
  func.func @transform_1(%arg0: i32) -> (i32, i32) {
    %c0_i32 = arith.constant 0 : i32
    %c0_i32_0 = arith.constant 0 : i32
    %c0_i32_1 = arith.constant 0 : i32
    return %c0_i32, %c0_i32_0 : i32, i32
  }
  func.func @transform_2(%arg0: i32) -> (i32, i32) {
    %c0_i32 = arith.constant 0 : i32
    %c0_i32_0 = arith.constant 0 : i32
    return %arg0, %c0_i32 : i32, i32
  }
}

</mosaic_0001>

<llo_original>
// kernel: tpu_custom_call.1
$region0: #{tpu_custom_call.1}
  #allocation0 [shape = 'u32[]', space=smem, size = 0x4, offset = 0x4, fixed_abs, tag = 'smem constant byte address 0x4 - core index']
  #allocation1 [shape = 'u32[144,128]{1,0:T(1,128)}', space=vmem, size = 0x12000, scoped, tag = 'internal scratch']
  %s0 = inlined_call_operand.hbm [shape: f32[16,64], index: 0, kind: input, shape index: {}]
  %s1 = inlined_call_operand.hbm [shape: f32[16,32], index: 1, kind: input, shape index: {}]
  %s2 = inlined_call_operand.hbm [shape: f32[16,64], index: 2, kind: output, shape index: {}]
  %s3 = sld [smem:[#allocation0]]
  $region26: #{tpu_custom_call.1} parent=0
    _
  %s5 = ssub.s32 1, %s3
  %s6 = scalar_select 0, %s5, %s3
  $region1: #{tpu_custom_call.1} parent=0
    #allocation2 [shape = 'u8[8192]{0}', space=vmem, size = 0x2000, scoped, tag = 'input window, operand 0, single buffered']
    #allocation3 [shape = 's32[1]{0}', space=sflag, size = 0x4, scoped, tag = 'scoped memory for tpu_custom_call.1']
    #allocation4 [shape = 's32[1]{0}', space=sflag, size = 0x4, scoped, tag = 'scoped memory for tpu_custom_call.1']
    #allocation5 [shape = 'u8[8192]{0}', space=vmem, size = 0x2000, scoped, tag = 'input window, operand 1, single buffered']
    #allocation6 [shape = 's32[1]{0}', space=sflag, size = 0x4, scoped, tag = 'scoped memory for tpu_custom_call.1']
    #allocation7 [shape = 'u8[8192]{0}', space=vmem, size = 0x2000, scoped, tag = 'output window, operand 0, single buffered']
    %7 = vsyncpa [#allocation3], 0
    %8 = vsyncpa [#allocation6], 0
    %9 = vsyncpa [#allocation4], 0
    // Predicated region
    $region2: #{tpu_custom_call.1} parent=1 // pred_check
      _
    $region3: #{tpu_custom_call.1} parent=1 // pred_check_branch
      %11 = sbr.rel (0) target = $region5
    $region4: #{tpu_custom_call.1} parent=1 // pred_region
      %s13 = ssub.s32 256, 256
      %14 = vsyncadd [#allocation3], %s13
      %s15 = sshll.u32 [#allocation2], 4
      %s16 = int_to_ptr.vmem [resolvable:$true] %s15
      %21 = dma.hbm_to_vmem [thread:$0]  %s0, 256, %s16, [#allocation3], 128, 128, 8
    $region5: #{tpu_custom_call.1} parent=1 // pred_fallthru
      _
    // Predicated region
    $region6: #{tpu_custom_call.1} parent=1 // pred_check
      _
    $region7: #{tpu_custom_call.1} parent=1 // pred_check_branch
      %23 = sbr.rel (0) target = $region9
    $region8: #{tpu_custom_call.1} parent=1 // pred_region
      %s25 = ssub.s32 256, 256
      %26 = vsyncadd [#allocation6], %s25
      %s27 = sshll.u32 [#allocation5], 4
      %s28 = int_to_ptr.vmem [resolvable:$true] %s27
      %33 = dma.hbm_to_vmem [thread:$0]  %s1, 256, %s28, [#allocation6], 128, 128, 8
    $region9: #{tpu_custom_call.1} parent=1 // pred_fallthru
      _
    // Predicated region
    $region10: #{tpu_custom_call.1} parent=1 // pred_check
      _
    $region11: #{tpu_custom_call.1} parent=1 // pred_check_branch
      %35 = sbr.rel (0) target = $region13
    $region12: #{tpu_custom_call.1} parent=1 // pred_region
      %36 = dma.done [#allocation3], 256
    $region13: #{tpu_custom_call.1} parent=1 // pred_fallthru
      _
    // Predicated region
    $region14: #{tpu_custom_call.1} parent=1 // pred_check
      _
    $region15: #{tpu_custom_call.1} parent=1 // pred_check_branch
      %38 = sbr.rel (0) target = $region17
    $region16: #{tpu_custom_call.1} parent=1 // pred_region
      %39 = dma.done [#allocation6], 256
    $region17: #{tpu_custom_call.1} parent=1 // pred_fallthru
      _
    %s40 = smul.u32 0, 16
    %s41 = scalar_lea.vmem [#allocation5], %s40
    %v42 = vld [vmem:[%s41] sm:$0xff]
    %v43 = vld [vmem:[%s41 + $0x8] sm:$0xff]
    %46 = vrot.lane.b32.xlu0 %v42, 32
    %v47 = vpop.permute.xlu0 %46
    %48 = vrot.lane.b32.xlu0 %v43, 32
    %v49 = vpop.permute.xlu0 %48
    %vm52 = vcmask 261120
    %v53 = vsel %vm52, %v42, %v47
    %v54 = vsel %vm52, %v43, %v49
    %v55 = vld [vmem:[#allocation2] sm:$0xff]
    %v56 = vld [vmem:[#allocation2 + $0x8] sm:$0xff]
    %v57 = vadd.f32 %v55, %v53
    %v58 = vadd.f32 %v56, %v54
    %vm59 = vcmask 523264
    %60 = vst.msk [vmem:[#allocation7] sm:$0xff] %vm59, %v57
    %61 = vst.msk [vmem:[#allocation7 + $0x8] sm:$0xff] %vm59, %v58
    // Predicated region
    $region18: #{tpu_custom_call.1} parent=1 // pred_check
      _
    $region19: #{tpu_custom_call.1} parent=1 // pred_check_branch
      %63 = sbr.rel (0) target = $region21
    $region20: #{tpu_custom_call.1} parent=1 // pred_region
      %s65 = ssub.s32 256, 256
      %66 = vsyncadd [#allocation4], %s65
      %s67 = sshll.u32 [#allocation7], 4
      %s68 = int_to_ptr.vmem [resolvable:$true] %s67
      %73 = dma.vmem_to_hbm [thread:$0]  %s68, 256, %s2, [#allocation4], 128, 128, 8
    $region21: #{tpu_custom_call.1} parent=1 // pred_fallthru
      _
    // Predicated region
    $region22: #{tpu_custom_call.1} parent=1 // pred_check
      _
    $region23: #{tpu_custom_call.1} parent=1 // pred_check_branch
      %75 = sbr.rel (0) target = $region25
    $region24: #{tpu_custom_call.1} parent=1 // pred_region
      %76 = dma.done [#allocation4], 256
    $region25: #{tpu_custom_call.1} parent=1 // pred_fallthru
      _
    %77 = vsyncpa [#allocation3], 1
    %78 = vsyncpa [#allocation6], 1
    %79 = vsyncpa [#allocation4], 1

</llo_original>
